<compile_context>
chip_gen: v7x
topology: tpu7x:2x2x1
jax: 0.10.0
libtpu: 0.0.40
codegen_flags: <defaults>
</compile_context>

<pallas_src>
from functools import partial

import jax
import jax.numpy as jnp
from jax.experimental import pallas as pl
from jax.experimental.pallas import tpu as pltpu


def gcn_kernel(a_ref, x_ref, w1_ref, b1_ref, w2_ref, b2_ref, o_ref):
    a = a_ref[...]                                   # [M, M] bf16 (block-diag Â)
    x = x_ref[...]                                   # [M, F] bf16

    # ---- layer 1: Â (X W1) + b1, then ReLU  (re-associated; F < H) ----
    xw1 = jnp.dot(x, w1_ref[...],
                  preferred_element_type=jnp.float32)                     # [M, H] f32
    h = jnp.dot(a, xw1.astype(jnp.bfloat16),
                preferred_element_type=jnp.float32) + b1_ref[...]         # [M, H] f32
    h = jnp.maximum(h, 0.0)

    # ---- layer 2: Â (h W2) + b2  (H > C, contract H first) ----
    hw = jnp.dot(h.astype(jnp.bfloat16), w2_ref[...],
                 preferred_element_type=jnp.float32)                      # [M, C] f32
    o_ref[...] = jnp.dot(a, hw.astype(jnp.bfloat16),
                         preferred_element_type=jnp.float32) + b2_ref[...]


@partial(jax.jit, static_argnames=("num_shards",))
def gcn_forward_batched(a_norm, x, w1, b1, w2, b2, *, num_shards=1):
    """a_norm: [B,N,N], x: [B,N,F]; shared weights. Returns [B,N,C] f32.

    num_shards=1 -> single fused grid step (best on v5e/v6e, 1 TensorCore).
    num_shards=2 -> one block-diagonal group per TensorCore on v7x (megacore).
    """
    bsz, n, _ = a_norm.shape
    f = x.shape[-1]
    h_dim = w1.shape[1]
    c = w2.shape[1]
    assert bsz % num_shards == 0
    g = bsz // num_shards                            # graphs per shard
    m = g * n                                        # packed rows per shard

    # bf16 MXU operands, f32 biases.
    a_bf = a_norm.astype(jnp.bfloat16)
    x_bf = x.astype(jnp.bfloat16)
    w1_bf = w1.astype(jnp.bfloat16)
    w2_bf = w2.astype(jnp.bfloat16)
    b1_f = b1.astype(jnp.float32).reshape(1, h_dim)
    b2_f = b2.astype(jnp.float32).reshape(1, c)

    # Block-diagonal packing: per shard, the g adjacencies go on the diagonal
    # of an [m, m] matrix; off-diagonal blocks are exact zeros, so the packed
    # matmul equals the per-graph matmuls bit-for-bit.
    a_grp = a_bf.reshape(num_shards, g, n, n)
    eye_g = jnp.eye(g, dtype=a_bf.dtype)
    # blk[s, b*n + i, c*n + j] = a[s, b, i, j] * eye[b, c]
    a_blk = (a_grp[:, :, :, None, :] *
             eye_g[None, :, None, :, None]).reshape(num_shards, m, m)
    x_blk = x_bf.reshape(num_shards, m, f)

    # Advisory cost hint (packed shapes, per-shard x num_shards).
    flops = num_shards * 2 * (m * f * h_dim + m * m * h_dim
                              + m * h_dim * c + m * m * c)
    bytes_accessed = (num_shards * (m * m + m * f) * 2          # A, X (bf16)
                      + (f * h_dim + h_dim * c) * 2             # W1, W2 (bf16)
                      + (h_dim + c) * 4                         # biases (f32)
                      + num_shards * m * c * 4)                 # output (f32)

    out = pl.pallas_call(
        gcn_kernel,
        out_shape=jax.ShapeDtypeStruct((num_shards, m, c), jnp.float32),
        grid=(num_shards,),
        in_specs=[
            pl.BlockSpec((None, m, m), lambda s: (s, 0, 0)),    # Â block-diag
            pl.BlockSpec((None, m, f), lambda s: (s, 0, 0)),    # X stacked
            pl.BlockSpec((f, h_dim), lambda s: (0, 0)),         # W1 (resident)
            pl.BlockSpec((1, h_dim), lambda s: (0, 0)),         # b1
            pl.BlockSpec((h_dim, c), lambda s: (0, 0)),         # W2 (resident)
            pl.BlockSpec((1, c), lambda s: (0, 0)),             # b2
        ],
        # Direct [.., C] output: block = full array dims; masked 2-lane stores
        # are ~1 KiB total here, cheaper than a 128-lane slab + wrapper slice.
        out_specs=pl.BlockSpec((None, m, c), lambda s: (s, 0, 0)),
        compiler_params=pltpu.CompilerParams(
            dimension_semantics=("parallel",)),
        cost_estimate=pl.CostEstimate(flops=flops, transcendentals=0,
                                      bytes_accessed=bytes_accessed),
    )(a_blk, x_blk, w1_bf, b1_f, w2_bf, b2_f)

    return out.reshape(bsz, n, c)


def gcn_forward(a_norm, x, w1, b1, w2, b2):
    """Single-graph convenience wrapper: a_norm [N,N], x [N,F] -> [N,C]."""
    return gcn_forward_batched(a_norm[None], x[None], w1, b1, w2, b2)[0]


def normalize_adjacency(adj):
    """D^{-1/2} (A + I) D^{-1/2} — standard GCN normalization (glue, plain JAX)."""
    n = adj.shape[0]
    a_hat = adj + jnp.eye(n, dtype=adj.dtype)
    deg = jnp.sum(a_hat, axis=1)
    d_inv_sqrt = 1.0 / jnp.sqrt(jnp.maximum(deg, 1e-12))
    return a_hat * d_inv_sqrt[:, None] * d_inv_sqrt[None, :]


def ref_forward_bf16(a, x, w1, b1, w2, b2):
    """Plain-JAX reference with the same bf16-operand / f32-accum semantics."""
    a_bf = a.astype(jnp.bfloat16)
    xw1 = jnp.dot(x.astype(jnp.bfloat16), w1.astype(jnp.bfloat16),
                  preferred_element_type=jnp.float32)
    h = jnp.dot(a_bf, xw1.astype(jnp.bfloat16),
                preferred_element_type=jnp.float32) + b1
    h = jnp.maximum(h, 0.0)
    hw = jnp.dot(h.astype(jnp.bfloat16), w2.astype(jnp.bfloat16),
                 preferred_element_type=jnp.float32)
    return jnp.dot(a_bf, hw.astype(jnp.bfloat16),
                   preferred_element_type=jnp.float32) + b2


if __name__ == "__main__":
    # Shapes implied by the module: 34 nodes (nn.Embedding(34, 5)), 5 input feats.
    N, IN_FEATS, HIDDEN, NUM_CLASSES = 34, 5, 16, 2
    BATCH = 4  # graphs packed block-diagonally into one pallas_call

    key = jax.random.PRNGKey(0)
    k_x, k_adj, k_w1, k_w2 = jax.random.split(key, 4)

    # Node features per graph (stand-in for the nn.Embedding weight).
    x_b = jax.random.normal(k_x, (BATCH, N, IN_FEATS), dtype=jnp.float32)

    # Deterministic random undirected graphs (density ~0.15) + self loops, normalized.
    upper = (jax.random.uniform(k_adj, (BATCH, N, N)) < 0.15).astype(jnp.float32)
    upper = jnp.triu(upper, k=1)
    adj_b = upper + jnp.swapaxes(upper, -1, -2)
    a_norm_b = jax.vmap(normalize_adjacency)(adj_b)

    # Deterministic parameter init (Glorot-style scaling).
    def glorot(k, shape):
        fan_in, fan_out = shape
        lim = jnp.sqrt(6.0 / (fan_in + fan_out))
        return jax.random.uniform(k, shape, jnp.float32, -lim, lim)

    w1 = glorot(k_w1, (IN_FEATS, HIDDEN))
    b1 = jnp.zeros((1, HIDDEN), dtype=jnp.float32)
    w2 = glorot(k_w2, (HIDDEN, NUM_CLASSES))
    b2 = jnp.zeros((1, NUM_CLASSES), dtype=jnp.float32)

    # --- single fused step (whole batch block-diagonal; best on v5e/v6e) ---
    out_b = gcn_forward_batched(a_norm_b, x_b, w1, b1, w2, b2, num_shards=1)
    out_b = jax.block_until_ready(out_b)
    assert out_b.shape == (BATCH, N, NUM_CLASSES)

    # --- two shards (one block-diagonal group per TensorCore on v7x) ---
    out_b2 = gcn_forward_batched(a_norm_b, x_b, w1, b1, w2, b2, num_shards=2)
    out_b2 = jax.block_until_ready(out_b2)
    assert out_b2.shape == (BATCH, N, NUM_CLASSES)

    # --- single-graph path (module-equivalent call) ---
    out_single = gcn_forward(a_norm_b[0], x_b[0], w1, b1, w2, b2)
    out_single = jax.block_until_ready(out_single)
    assert out_single.shape == (N, NUM_CLASSES)

    # Reference checks (same bf16/f32 mixed-precision recipe).
    ref_b = jax.vmap(lambda a, x: ref_forward_bf16(a, x, w1, b1, w2, b2))(
        a_norm_b, x_b)
    assert jnp.allclose(out_b, ref_b, atol=2e-2, rtol=2e-2)
    assert jnp.allclose(out_b2, ref_b, atol=2e-2, rtol=2e-2)
    assert jnp.allclose(out_single, ref_b[0], atol=2e-2, rtol=2e-2)

    # Loose sanity check against full-f32 math (bf16 rounding tolerance).
    h_f32 = jnp.maximum(jnp.einsum("bij,bjf->bif", a_norm_b, x_b) @ w1 + b1, 0.0)
    ref_f32 = jnp.einsum("bij,bjh->bih", a_norm_b, h_f32 @ w2) + b2
    assert jnp.allclose(out_b, ref_f32, atol=6e-2, rtol=6e-2)

    print("KERNEL_OK")
</pallas_src>

<mosaic_0001>
module attributes {stable_mosaic.version = 11 : i64} {
  func.func @gcn_kernel(%arg0: i32, %arg1: memref<1x136x136xbf16, #tpu.memory_space<vmem>>, %arg2: memref<1x136x5xbf16, #tpu.memory_space<vmem>>, %arg3: memref<5x16xbf16, #tpu.memory_space<vmem>>, %arg4: memref<1x16xf32, #tpu.memory_space<vmem>>, %arg5: memref<16x2xbf16, #tpu.memory_space<vmem>>, %arg6: memref<1x2xf32, #tpu.memory_space<vmem>>, %arg7: memref<1x136x2xf32, #tpu.memory_space<vmem>>) attributes {dimension_semantics = [#tpu.dimension_semantics<parallel>], iteration_bounds = array<i64: 1>, scalar_prefetch = 0 : i64, scratch_operands = 0 : i64, tpu.core_type = #tpu.core_type<tc>, window_params = [{transform_indices = @transform_0, window_bounds = array<i64: 1, 136, 136>}, {transform_indices = @transform_1, window_bounds = array<i64: 1, 136, 5>}, {pipeline_mode = #tpu.pipeline_mode<synchronous>, transform_indices = @transform_2, window_bounds = array<i64: 5, 16>}, {pipeline_mode = #tpu.pipeline_mode<synchronous>, transform_indices = @transform_3, window_bounds = array<i64: 1, 16>}, {pipeline_mode = #tpu.pipeline_mode<synchronous>, transform_indices = @transform_4, window_bounds = array<i64: 16, 2>}, {pipeline_mode = #tpu.pipeline_mode<synchronous>, transform_indices = @transform_5, window_bounds = array<i64: 1, 2>}, {transform_indices = @transform_6, window_bounds = array<i64: 1, 136, 2>}]} {
    %c0 = arith.constant 0 : index
    %c0_0 = arith.constant 0 : index
    %c0_1 = arith.constant 0 : index
    %0 = vector.load %arg1[%c0, %c0_0, %c0_1] : memref<1x136x136xbf16, #tpu.memory_space<vmem>>, vector<1x136x136xbf16>
    %1 = vector.shape_cast %0 : vector<1x136x136xbf16> to vector<136x136xbf16>
    %c0_2 = arith.constant 0 : index
    %c0_3 = arith.constant 0 : index
    %c0_4 = arith.constant 0 : index
    %2 = vector.load %arg2[%c0_2, %c0_3, %c0_4] : memref<1x136x5xbf16, #tpu.memory_space<vmem>>, vector<1x136x5xbf16>
    %3 = vector.shape_cast %2 : vector<1x136x5xbf16> to vector<136x5xbf16>
    %c0_5 = arith.constant 0 : index
    %c0_6 = arith.constant 0 : index
    %4 = vector.load %arg3[%c0_5, %c0_6] : memref<5x16xbf16, #tpu.memory_space<vmem>>, vector<5x16xbf16>
    %cst = arith.constant dense<0.000000e+00> : vector<136x16xf32>
    %5 = tpu.matmul %3, %4, %cst {dimension_numbers = #tpu.dot_dimension_numbers<[1], [0], [0], [1], [0, 0, 1, 1], [], []>} : vector<136x5xbf16>, vector<5x16xbf16>, vector<136x16xf32> -> vector<136x16xf32>
    %6 = arith.truncf %5 : vector<136x16xf32> to vector<136x16xbf16>
    %cst_7 = arith.constant dense<0.000000e+00> : vector<136x16xf32>
    %7 = tpu.matmul %1, %6, %cst_7 {dimension_numbers = #tpu.dot_dimension_numbers<[1], [0], [0], [1], [0, 0, 1, 1], [], []>} : vector<136x136xbf16>, vector<136x16xbf16>, vector<136x16xf32> -> vector<136x16xf32>
    %c0_8 = arith.constant 0 : index
    %c0_9 = arith.constant 0 : index
    %8 = vector.load %arg4[%c0_8, %c0_9] : memref<1x16xf32, #tpu.memory_space<vmem>>, vector<1x16xf32>
    %9 = vector.broadcast %8 : vector<1x16xf32> to vector<136x16xf32>
    %10 = arith.addf %7, %9 : vector<136x16xf32>
    %cst_10 = arith.constant 0.000000e+00 : f32
    %11 = vector.broadcast %cst_10 : f32 to vector<136x16xf32>
    %12 = arith.maximumf %10, %11 : vector<136x16xf32>
    %13 = arith.truncf %12 : vector<136x16xf32> to vector<136x16xbf16>
    %c0_11 = arith.constant 0 : index
    %c0_12 = arith.constant 0 : index
    %14 = vector.load %arg5[%c0_11, %c0_12] : memref<16x2xbf16, #tpu.memory_space<vmem>>, vector<16x2xbf16>
    %cst_13 = arith.constant dense<0.000000e+00> : vector<136x2xf32>
    %15 = tpu.matmul %13, %14, %cst_13 {dimension_numbers = #tpu.dot_dimension_numbers<[1], [0], [0], [1], [0, 0, 1, 1], [], []>} : vector<136x16xbf16>, vector<16x2xbf16>, vector<136x2xf32> -> vector<136x2xf32>
    %16 = arith.truncf %15 : vector<136x2xf32> to vector<136x2xbf16>
    %cst_14 = arith.constant dense<0.000000e+00> : vector<136x2xf32>
    %17 = tpu.matmul %1, %16, %cst_14 {dimension_numbers = #tpu.dot_dimension_numbers<[1], [0], [0], [1], [0, 0, 1, 1], [], []>} : vector<136x136xbf16>, vector<136x2xbf16>, vector<136x2xf32> -> vector<136x2xf32>
    %c0_15 = arith.constant 0 : index
    %c0_16 = arith.constant 0 : index
    %18 = vector.load %arg6[%c0_15, %c0_16] : memref<1x2xf32, #tpu.memory_space<vmem>>, vector<1x2xf32>
    %19 = vector.broadcast %18 : vector<1x2xf32> to vector<136x2xf32>
    %20 = arith.addf %17, %19 : vector<136x2xf32>
    %c0_17 = arith.constant 0 : index
    %c0_18 = arith.constant 0 : index
    %c0_19 = arith.constant 0 : index
    %21 = vector.load %arg7[%c0_17, %c0_18, %c0_19] : memref<1x136x2xf32, #tpu.memory_space<vmem>>, vector<1x136x2xf32>
    %22 = vector.shape_cast %21 : vector<1x136x2xf32> to vector<136x2xf32>
    %23 = vector.shape_cast %20 : vector<136x2xf32> to vector<1x136x2xf32>
    tpu.vector_store %arg7[%c0_17, %c0_18, %c0_19], %23 {strides = array<i32>} : memref<1x136x2xf32, #tpu.memory_space<vmem>>, vector<1x136x2xf32>,
    return
  }
  func.func @transform_0(%arg0: i32) -> (i32, i32, i32) {
    %c0_i32 = arith.constant 0 : i32
    %c0_i32_0 = arith.constant 0 : i32
    %c0_i32_1 = arith.constant 0 : i32
    return %arg0, %c0_i32, %c0_i32_0 : i32, i32, i32
  }
  func.func @transform_1(%arg0: i32) -> (i32, i32, i32) {
    %c0_i32 = arith.constant 0 : i32
    %c0_i32_0 = arith.constant 0 : i32
    %c0_i32_1 = arith.constant 0 : i32
    return %arg0, %c0_i32, %c0_i32_0 : i32, i32, i32
  }
  func.func @transform_2(%arg0: i32) -> (i32, i32) {
    %c0_i32 = arith.constant 0 : i32
    %c0_i32_0 = arith.constant 0 : i32
    %c0_i32_1 = arith.constant 0 : i32
    return %c0_i32, %c0_i32_0 : i32, i32
  }
  func.func @transform_3(%arg0: i32) -> (i32, i32) {
    %c0_i32 = arith.constant 0 : i32
    %c0_i32_0 = arith.constant 0 : i32
    %c0_i32_1 = arith.constant 0 : i32
    return %c0_i32, %c0_i32_0 : i32, i32
  }
  func.func @transform_4(%arg0: i32) -> (i32, i32) {
    %c0_i32 = arith.constant 0 : i32
    %c0_i32_0 = arith.constant 0 : i32
    %c0_i32_1 = arith.constant 0 : i32
    return %c0_i32, %c0_i32_0 : i32, i32
  }
  func.func @transform_5(%arg0: i32) -> (i32, i32) {
    %c0_i32 = arith.constant 0 : i32
    %c0_i32_0 = arith.constant 0 : i32
    %c0_i32_1 = arith.constant 0 : i32
    return %c0_i32, %c0_i32_0 : i32, i32
  }
  func.func @transform_6(%arg0: i32) -> (i32, i32, i32) {
    %c0_i32 = arith.constant 0 : i32
    %c0_i32_0 = arith.constant 0 : i32
    %c0_i32_1 = arith.constant 0 : i32
    return %arg0, %c0_i32, %c0_i32_0 : i32, i32, i32
  }
}

</mosaic_0001>

<llo_original>
// kernel: gcn_forward_batched.1
$region0: #{gcn_forward_batched.1}
  #allocation0 [shape = 'u32[]', space=smem, size = 0x4, offset = 0x4, fixed_abs, tag = 'smem constant byte address 0x4 - core index']
  #allocation1 [shape = 'u32[144,128]{1,0:T(1,128)}', space=vmem, size = 0x12000, scoped, tag = 'internal scratch']
  %s0 = inlined_call_operand.vmem [shape: bf16[1,136,136], index: 0, kind: input, shape index: {}]
  %s1 = inlined_call_operand.vmem [shape: bf16[1,136,5], index: 1, kind: input, shape index: {}]
  %s2 = inlined_call_operand.vmem [shape: bf16[5,16], index: 2, kind: input, shape index: {}]
  %s3 = inlined_call_operand.vmem [shape: f32[1,16], index: 3, kind: input, shape index: {}]
  %s4 = inlined_call_operand.vmem [shape: bf16[16,2], index: 4, kind: input, shape index: {}]
  %s5 = inlined_call_operand.vmem [shape: f32[1,2], index: 5, kind: input, shape index: {}]
  %s6 = inlined_call_operand.vmem [shape: f32[1,136,2], index: 6, kind: output, shape index: {}]
  %s7 = sld [smem:[#allocation0]]
  $region34: #{gcn_forward_batched.1} parent=0
    _
  %s9 = ssub.s32 1, %s7
  %s10 = scalar_select 0, %s9, %s7
  // Predicated region
  $region2: #{gcn_forward_batched.1} parent=0 // pred_check
    _
  $region3: #{gcn_forward_batched.1} parent=0 // pred_check_branch
    %12 = sbr.rel (0) target = $region5
  $region4: #{gcn_forward_batched.1} parent=0 // pred_region
    _
  $region5: #{gcn_forward_batched.1} parent=0 // pred_fallthru
    _
  // Predicated region
  $region6: #{gcn_forward_batched.1} parent=0 // pred_check
    _
  $region7: #{gcn_forward_batched.1} parent=0 // pred_check_branch
    %14 = sbr.rel (0) target = $region9
  $region8: #{gcn_forward_batched.1} parent=0 // pred_region
    _
  $region9: #{gcn_forward_batched.1} parent=0 // pred_fallthru
    _
  // Predicated region
  $region10: #{gcn_forward_batched.1} parent=0 // pred_check
    _
  $region11: #{gcn_forward_batched.1} parent=0 // pred_check_branch
    %16 = sbr.rel (0) target = $region13
  $region12: #{gcn_forward_batched.1} parent=0 // pred_region
    _
  $region13: #{gcn_forward_batched.1} parent=0 // pred_fallthru
    _
  // Predicated region
  $region14: #{gcn_forward_batched.1} parent=0 // pred_check
    _
  $region15: #{gcn_forward_batched.1} parent=0 // pred_check_branch
    %18 = sbr.rel (0) target = $region17
  $region16: #{gcn_forward_batched.1} parent=0 // pred_region
    _
  $region17: #{gcn_forward_batched.1} parent=0 // pred_fallthru
    _
  // Predicated region
  $region18: #{gcn_forward_batched.1} parent=0 // pred_check
    _
  $region19: #{gcn_forward_batched.1} parent=0 // pred_check_branch
    %20 = sbr.rel (0) target = $region21
  $region20: #{gcn_forward_batched.1} parent=0 // pred_region
    _
  $region21: #{gcn_forward_batched.1} parent=0 // pred_fallthru
    _
  // Predicated region
  $region22: #{gcn_forward_batched.1} parent=0 // pred_check
    _
  $region23: #{gcn_forward_batched.1} parent=0 // pred_check_branch
    %22 = sbr.rel (0) target = $region25
  $region24: #{gcn_forward_batched.1} parent=0 // pred_region
    _
  $region25: #{gcn_forward_batched.1} parent=0 // pred_fallthru
    _
  %v24 = vld [vmem:[%s0] sm:$0xff]
  %v25 = vld [vmem:[%s0 + $0x8] sm:$0xff]
  %v26 = vld [vmem:[%s0 + $0x10] sm:$0xff]
  %v27 = vld [vmem:[%s0 + $0x18] sm:$0xff]
  %v28 = vld [vmem:[%s0 + $0x20] sm:$0xff]
  %v29 = vld [vmem:[%s0 + $0x28] sm:$0xff]
  %v30 = vld [vmem:[%s0 + $0x30] sm:$0xff]
  %v31 = vld [vmem:[%s0 + $0x38] sm:$0xff]
  %v32 = vld [vmem:[%s0 + $0x40] sm:$0xff]
  %v33 = vld [vmem:[%s0 + $0x48] sm:$0xff]
  %v34 = vld [vmem:[%s0 + $0x50] sm:$0xff]
  %v35 = vld [vmem:[%s0 + $0x58] sm:$0xff]
  %v36 = vld [vmem:[%s0 + $0x60] sm:$0xff]
  %v37 = vld [vmem:[%s0 + $0x68] sm:$0xff]
  %v38 = vld [vmem:[%s0 + $0x70] sm:$0xff]
  %v39 = vld [vmem:[%s0 + $0x78] sm:$0xff]
  %v40 = vld [vmem:[%s0 + $0x80] sm:$0xff]
  %v41 = vld [vmem:[%s1] sm:$0xf]
  %v42 = vld [vmem:[%s1 + $0x4] sm:$0xf]
  %v43 = vld [vmem:[%s1 + $0x8] sm:$0xf]
  %v44 = vld [vmem:[%s1 + $0xc] sm:$0xf]
  %v45 = vld [vmem:[%s1 + $0x10] sm:$0xf]
  %v46 = vld [vmem:[%s1 + $0x14] sm:$0xf]
  %v47 = vld [vmem:[%s1 + $0x18] sm:$0xf]
  %v48 = vld [vmem:[%s1 + $0x1c] sm:$0xf]
  %v49 = vld [vmem:[%s1 + $0x20] sm:$0xf]
  %v50 = vld [vmem:[%s1 + $0x24] sm:$0xf]
  %v51 = vld [vmem:[%s1 + $0x28] sm:$0xf]
  %v52 = vld [vmem:[%s1 + $0x2c] sm:$0xf]
  %v53 = vld [vmem:[%s1 + $0x30] sm:$0xf]
  %v54 = vld [vmem:[%s1 + $0x34] sm:$0xf]
  %v55 = vld [vmem:[%s1 + $0x38] sm:$0xf]
  %v56 = vld [vmem:[%s1 + $0x3c] sm:$0xf]
  %v57 = vld [vmem:[%s1 + $0x40] sm:$0xf]
  %v58 = vld [vmem:[%s2] sm:$0x7]
  %v76 = vunpack.c.l.b16 %v41
  %v77 = vunpack.c.l.b16 %v42
  %v78 = vunpack.c.l.b16 %v43
  %v79 = vunpack.c.l.b16 %v44
  %v80 = vunpack.c.l.b16 %v45
  %v81 = vunpack.c.l.b16 %v46
  %v82 = vunpack.c.l.b16 %v47
  %v83 = vunpack.c.l.b16 %v48
  %v84 = vunpack.c.l.b16 %v49
  %v85 = vunpack.c.l.b16 %v50
  %v86 = vunpack.c.l.b16 %v51
  %v87 = vunpack.c.l.b16 %v52
  %v88 = vunpack.c.l.b16 %v53
  %v89 = vunpack.c.l.b16 %v54
  %v90 = vunpack.c.l.b16 %v55
  %v91 = vunpack.c.l.b16 %v56
  %v92 = vunpack.c.l.b16 %v57
  %v93 = vpack.c.b16 %v77, %v76
  %v94 = vpack.c.b16 %v79, %v78
  %v95 = vpack.c.b16 %v81, %v80
  %v96 = vpack.c.b16 %v83, %v82
  %v97 = vpack.c.b16 %v85, %v84
  %v98 = vpack.c.b16 %v87, %v86
  %v99 = vpack.c.b16 %v89, %v88
  %v100 = vpack.c.b16 %v91, %v90
  %v101 = vpack.c.b16 %v92, %v92
  %vm102 = vcmask 39936
  %v104 = vsel %vm102, %v93, 0
  %v107 = vsel %vm102, %v94, 0
  %v110 = vsel %vm102, %v95, 0
  %v113 = vsel %vm102, %v96, 0
  %v116 = vsel %vm102, %v97, 0
  %v119 = vsel %vm102, %v98, 0
  %v122 = vsel %vm102, %v99, 0
  %v125 = vsel %vm102, %v100, 0
  %v128 = vsel %vm102, %v101, 0
  %vm130 = vcmask 1041408
  %vm131 = vcmask 1042432
  %v132 = vsel %vm130, 4294967295, 65535
  %v133 = vsel %vm131, %v132, 0
  %v135 = vand.u32 %v58, %v133
  %137 = vmatprep.subr.bf16.mxu0 0
  %138 = vmatpush1.bf16.msra.mxu0 %v135
  %139 = vmatprep.subr.bf16.mxu0 0
  %140 = vmatpush1.bf16.msra.mxu0 0
  %141 = vmatprep.subr.bf16.mxu0 0
  %142 = vmatpush1.bf16.msra.mxu0 0
  %143 = vmatprep.subr.bf16.mxu0 0
  %144 = vmatpush1.bf16.msra.mxu0 0
  %145 = vmatprep.subr.bf16.mxu0 0
  %146 = vmatpush1.bf16.msra.mxu0 0
  %147 = vmatprep.subr.bf16.mxu0 0
  %148 = vmatpush1.bf16.msra.mxu0 0
  %149 = vmatprep.subr.bf16.mxu0 0
  %150 = vmatpush1.bf16.msra.mxu0 0
  %151 = vmatprep.subr.bf16.mxu0 0
  %152 = vmatpush1.bf16.msra.mxu0 0
  %153 = vmatprep.subr.bf16.mxu0 0
  %154 = vmatpush1.bf16.msra.mxu0 0
  %155 = vmatprep.subr.bf16.mxu0 0
  %156 = vmatpush1.bf16.msra.mxu0 0
  %157 = vmatprep.subr.bf16.mxu0 0
  %158 = vmatpush1.bf16.msra.mxu0 0
  %159 = vmatprep.subr.bf16.mxu0 0
  %160 = vmatpush1.bf16.msra.mxu0 0
  %161 = vmatprep.subr.bf16.mxu0 0
  %162 = vmatpush1.bf16.msra.mxu0 0
  %163 = vmatprep.subr.bf16.mxu0 0
  %164 = vmatpush1.bf16.msra.mxu0 0
  %165 = vmatprep.subr.bf16.mxu0 0
  %166 = vmatpush1.bf16.msra.mxu0 0
  %167 = vmatprep.subr.bf16.mxu0 0
  %168 = vmatpush1.bf16.msra.mxu0 0
  %169 = vmatprep.mubr.bf16.mxu0 0
  %170 = vmatmul.mubr.bf16.gmra.mrb[0].mxu0 %v104
  %v171 = vpop.f32.mrb[0].mxu0
  %v172 = vadd.f32 0.0, %v171
  %v173 = vpop.f32.mrb[0].mxu0
  %v174 = vpop.f32.mrb[0].mxu0
  %v175 = vadd.f32 0.0, %v174
  %v176 = vpop.f32.mrb[0].mxu0
  %177 = vmatprep.mubr.bf16.mxu0 0
  %178 = vmatmul.mubr.bf16.gmra.mrb[0].mxu0 %v107
  %v179 = vpop.f32.mrb[0].mxu0
  %v180 = vadd.f32 0.0, %v179
  %v181 = vpop.f32.mrb[0].mxu0
  %v182 = vpop.f32.mrb[0].mxu0
  %v183 = vadd.f32 0.0, %v182
  %v184 = vpop.f32.mrb[0].mxu0
  %185 = vmatprep.mubr.bf16.mxu0 0
  %186 = vmatmul.mubr.bf16.gmra.mrb[0].mxu0 %v110
  %v187 = vpop.f32.mrb[0].mxu0
  %v188 = vadd.f32 0.0, %v187
  %v189 = vpop.f32.mrb[0].mxu0
  %v190 = vpop.f32.mrb[0].mxu0
  %v191 = vadd.f32 0.0, %v190
  %v192 = vpop.f32.mrb[0].mxu0
  %193 = vmatprep.mubr.bf16.mxu0 0
  %194 = vmatmul.mubr.bf16.gmra.mrb[0].mxu0 %v113
  %v195 = vpop.f32.mrb[0].mxu0
  %v196 = vadd.f32 0.0, %v195
  %v197 = vpop.f32.mrb[0].mxu0
  %v198 = vpop.f32.mrb[0].mxu0
  %v199 = vadd.f32 0.0, %v198
  %v200 = vpop.f32.mrb[0].mxu0
  %201 = vmatprep.mubr.bf16.mxu0 0
  %202 = vmatmul.mubr.bf16.gmra.mrb[0].mxu0 %v116
  %v203 = vpop.f32.mrb[0].mxu0
  %v204 = vadd.f32 0.0, %v203
  %v205 = vpop.f32.mrb[0].mxu0
  %v206 = vpop.f32.mrb[0].mxu0
  %v207 = vadd.f32 0.0, %v206
  %v208 = vpop.f32.mrb[0].mxu0
  %209 = vmatprep.mubr.bf16.mxu0 0
  %210 = vmatmul.mubr.bf16.gmra.mrb[0].mxu0 %v119
  %v211 = vpop.f32.mrb[0].mxu0
  %v212 = vadd.f32 0.0, %v211
  %v213 = vpop.f32.mrb[0].mxu0
  %v214 = vpop.f32.mrb[0].mxu0
  %v215 = vadd.f32 0.0, %v214
  %v216 = vpop.f32.mrb[0].mxu0
  %217 = vmatprep.mubr.bf16.mxu0 0
  %218 = vmatmul.mubr.bf16.gmra.mrb[0].mxu0 %v122
  %v219 = vpop.f32.mrb[0].mxu0
  %v220 = vadd.f32 0.0, %v219
  %v221 = vpop.f32.mrb[0].mxu0
  %v222 = vpop.f32.mrb[0].mxu0
  %v223 = vadd.f32 0.0, %v222
  %v224 = vpop.f32.mrb[0].mxu0
  %225 = vmatprep.mubr.bf16.mxu0 0
  %226 = vmatmul.mubr.bf16.gmra.mrb[0].mxu0 %v125
  %v227 = vpop.f32.mrb[0].mxu0
  %v228 = vadd.f32 0.0, %v227
  %v229 = vpop.f32.mrb[0].mxu0
  %v230 = vpop.f32.mrb[0].mxu0
  %v231 = vadd.f32 0.0, %v230
  %v232 = vpop.f32.mrb[0].mxu0
  %233 = vmatprep.mubr.bf16.mxu0 0
  %234 = vmatmul.mubr.bf16.gmra.mrb[0].mxu0 %v128
  %v235 = vpop.f32.mrb[0].mxu0
  %v236 = vadd.f32 0.0, %v235
  %v237 = vpop.f32.mrb[0].mxu0
  %v238 = vpop.f32.mrb[0].mxu0
  %v239 = vpop.f32.mrb[0].mxu0
  %240 = vdwg.mxu0
  %v241 = vpack.c.bf16 %v175, %v172
  %v242 = vpack.c.bf16 %v183, %v180
  %v243 = vpack.c.bf16 %v191, %v188
  %v244 = vpack.c.bf16 %v199, %v196
  %v245 = vpack.c.bf16 %v207, %v204
  %v246 = vpack.c.bf16 %v215, %v212
  %v247 = vpack.c.bf16 %v223, %v220
  %v248 = vpack.c.bf16 %v231, %v228
  %v249 = vpack.c.bf16 %v236, %v236
  %v250 = vld [vmem:[%s3] sm:$0x1]
  %v252 = vlaneseq
  %v253 = vshrl.u32 %v252, 7
  %v254 = vsub.s32 0, %v253
  %v255 = vrot.slane %v250, %v254
  %v274 = vunpack.c.l.b16 %v24
  %v275 = vunpack.c.h.b16 %v24
  %v276 = vunpack.c.l.b16 %v25
  %v277 = vunpack.c.h.b16 %v25
  %v278 = vunpack.c.l.b16 %v26
  %v279 = vunpack.c.h.b16 %v26
  %v280 = vunpack.c.l.b16 %v27
  %v281 = vunpack.c.h.b16 %v27
  %v282 = vunpack.c.l.b16 %v28
  %v283 = vunpack.c.h.b16 %v28
  %v284 = vunpack.c.l.b16 %v29
  %v285 = vunpack.c.h.b16 %v29
  %v286 = vunpack.c.l.b16 %v30
  %v287 = vunpack.c.h.b16 %v30
  %v288 = vunpack.c.l.b16 %v31
  %v289 = vunpack.c.h.b16 %v31
  %v290 = vunpack.c.l.b16 %v32
  %v291 = vunpack.c.h.b16 %v32
  %v292 = vunpack.c.l.b16 %v33
  %v293 = vunpack.c.h.b16 %v33
  %v294 = vunpack.c.l.b16 %v34
  %v295 = vunpack.c.h.b16 %v34
  %v296 = vunpack.c.l.b16 %v35
  %v297 = vunpack.c.h.b16 %v35
  %v298 = vunpack.c.l.b16 %v36
  %v299 = vunpack.c.h.b16 %v36
  %v300 = vunpack.c.l.b16 %v37
  %v301 = vunpack.c.h.b16 %v37
  %v302 = vunpack.c.l.b16 %v38
  %v303 = vunpack.c.h.b16 %v38
  %v304 = vunpack.c.l.b16 %v39
  %v305 = vunpack.c.h.b16 %v39
  %v306 = vunpack.c.l.b16 %v40
  %v307 = vunpack.c.h.b16 %v40
  %v308 = vpack.c.b16 %v276, %v274
  %v309 = vpack.c.b16 %v277, %v275
  %v310 = vpack.c.b16 %v280, %v278
  %v311 = vpack.c.b16 %v281, %v279
  %v312 = vpack.c.b16 %v284, %v282
  %v313 = vpack.c.b16 %v285, %v283
  %v314 = vpack.c.b16 %v288, %v286
  %v315 = vpack.c.b16 %v289, %v287
  %v316 = vpack.c.b16 %v292, %v290
  %v317 = vpack.c.b16 %v293, %v291
  %v318 = vpack.c.b16 %v296, %v294
  %v319 = vpack.c.b16 %v297, %v295
  %v320 = vpack.c.b16 %v300, %v298
  %v321 = vpack.c.b16 %v301, %v299
  %v322 = vpack.c.b16 %v304, %v302
  %v323 = vpack.c.b16 %v305, %v303
  %v324 = vpack.c.b16 %v306, %v306
  %v325 = vpack.c.b16 %v307, %v307
  %vm335 = vcmask 64512
  %v337 = vsel %vm335, %v309, 0
  %v340 = vsel %vm335, %v311, 0
  %v343 = vsel %vm335, %v313, 0
  %v346 = vsel %vm335, %v315, 0
  %v349 = vsel %vm335, %v317, 0
  %v352 = vsel %vm335, %v319, 0
  %v355 = vsel %vm335, %v321, 0
  %v358 = vsel %vm335, %v323, 0
  %v361 = vsel %vm335, %v325, 0
  %vm363 = vcmask 1043456
  %v365 = vsel %vm363, %v249, 0
  %367 = vmatprep.subr.bf16.mxu0 0
  %368 = vmatpush1.bf16.msra.mxu0 %v241
  %369 = vmatprep.subr.bf16.mxu0 0
  %370 = vmatpush1.bf16.msra.mxu0 %v242
  %371 = vmatprep.subr.bf16.mxu0 0
  %372 = vmatpush1.bf16.msra.mxu0 %v243
  %373 = vmatprep.subr.bf16.mxu0 0
  %374 = vmatpush1.bf16.msra.mxu0 %v244
  %375 = vmatprep.subr.bf16.mxu0 0
  %376 = vmatpush1.bf16.msra.mxu0 %v245
  %377 = vmatprep.subr.bf16.mxu0 0
  %378 = vmatpush1.bf16.msra.mxu0 %v246
  %379 = vmatprep.subr.bf16.mxu0 0
  %380 = vmatpush1.bf16.msra.mxu0 %v247
  %381 = vmatprep.subr.bf16.mxu0 0
  %382 = vmatpush1.bf16.msra.mxu0 %v248
  %383 = vmatprep.subr.bf16.mxu0 0
  %384 = vmatpush1.bf16.msra.mxu0 %v365
  %385 = vmatprep.subr.bf16.mxu0 0
  %386 = vmatpush1.bf16.msra.mxu0 0
  %387 = vmatprep.subr.bf16.mxu0 0
  %388 = vmatpush1.bf16.msra.mxu0 0
  %389 = vmatprep.subr.bf16.mxu0 0
  %390 = vmatpush1.bf16.msra.mxu0 0
  %391 = vmatprep.subr.bf16.mxu0 0
  %392 = vmatpush1.bf16.msra.mxu0 0
  %393 = vmatprep.subr.bf16.mxu0 0
  %394 = vmatpush1.bf16.msra.mxu0 0
  %395 = vmatprep.subr.bf16.mxu0 0
  %396 = vmatpush1.bf16.msra.mxu0 0
  %397 = vmatprep.subr.bf16.mxu0 0
  %398 = vmatpush1.bf16.msra.mxu0 0
  %399 = vmatprep.mubr.bf16.mxu0 %v337
  %400 = vmatmul.mubr.bf16.gmra.mrb[0].mxu0 %v308
  %v401 = vpop.f32.mrb[0].mxu0
  %v402 = vadd.f32 %v255, %v401
  %v403 = vpop.f32.mrb[0].mxu0
  %v404 = vpop.f32.mrb[0].mxu0
  %v405 = vadd.f32 %v255, %v404
  %v406 = vpop.f32.mrb[0].mxu0
  %407 = vmatprep.mubr.bf16.mxu0 %v340
  %408 = vmatmul.mubr.bf16.gmra.mrb[0].mxu0 %v310
  %v409 = vpop.f32.mrb[0].mxu0
  %v410 = vadd.f32 %v255, %v409
  %v411 = vpop.f32.mrb[0].mxu0
  %v412 = vpop.f32.mrb[0].mxu0
  %v413 = vadd.f32 %v255, %v412
  %v414 = vpop.f32.mrb[0].mxu0
  %415 = vmatprep.mubr.bf16.mxu0 %v343
  %416 = vmatmul.mubr.bf16.gmra.mrb[0].mxu0 %v312
  %v417 = vpop.f32.mrb[0].mxu0
  %v418 = vadd.f32 %v255, %v417
  %v419 = vpop.f32.mrb[0].mxu0
  %v420 = vpop.f32.mrb[0].mxu0
  %v421 = vadd.f32 %v255, %v420
  %v422 = vpop.f32.mrb[0].mxu0
  %423 = vmatprep.mubr.bf16.mxu0 %v346
  %424 = vmatmul.mubr.bf16.gmra.mrb[0].mxu0 %v314
  %v425 = vpop.f32.mrb[0].mxu0
  %v426 = vadd.f32 %v255, %v425
  %v427 = vpop.f32.mrb[0].mxu0
  %v428 = vpop.f32.mrb[0].mxu0
  %v429 = vadd.f32 %v255, %v428
  %v430 = vpop.f32.mrb[0].mxu0
  %431 = vmatprep.mubr.bf16.mxu0 %v349
  %432 = vmatmul.mubr.bf16.gmra.mrb[0].mxu0 %v316
  %v433 = vpop.f32.mrb[0].mxu0
  %v434 = vadd.f32 %v255, %v433
  %v435 = vpop.f32.mrb[0].mxu0
  %v436 = vpop.f32.mrb[0].mxu0
  %v437 = vadd.f32 %v255, %v436
  %v438 = vpop.f32.mrb[0].mxu0
  %439 = vmatprep.mubr.bf16.mxu0 %v352
  %440 = vmatmul.mubr.bf16.gmra.mrb[0].mxu0 %v318
  %v441 = vpop.f32.mrb[0].mxu0
  %v442 = vadd.f32 %v255, %v441
  %v443 = vpop.f32.mrb[0].mxu0
  %v444 = vpop.f32.mrb[0].mxu0
  %v445 = vadd.f32 %v255, %v444
  %v446 = vpop.f32.mrb[0].mxu0
  %447 = vmatprep.mubr.bf16.mxu0 %v355
  %448 = vmatmul.mubr.bf16.gmra.mrb[0].mxu0 %v320
  %v449 = vpop.f32.mrb[0].mxu0
  %v450 = vadd.f32 %v255, %v449
  %v451 = vpop.f32.mrb[0].mxu0
  %v452 = vpop.f32.mrb[0].mxu0
  %v453 = vadd.f32 %v255, %v452
  %v454 = vpop.f32.mrb[0].mxu0
  %455 = vmatprep.mubr.bf16.mxu0 %v358
  %456 = vmatmul.mubr.bf16.gmra.mrb[0].mxu0 %v322
  %v457 = vpop.f32.mrb[0].mxu0
  %v458 = vadd.f32 %v255, %v457
  %v459 = vpop.f32.mrb[0].mxu0
  %v460 = vpop.f32.mrb[0].mxu0
  %v461 = vadd.f32 %v255, %v460
  %v462 = vpop.f32.mrb[0].mxu0
  %463 = vmatprep.mubr.bf16.mxu0 %v361
  %464 = vmatmul.mubr.bf16.gmra.mrb[0].mxu0 %v324
  %v465 = vpop.f32.mrb[0].mxu0
  %v466 = vadd.f32 %v255, %v465
  %v467 = vpop.f32.mrb[0].mxu0
  %v468 = vpop.f32.mrb[0].mxu0
  %v469 = vpop.f32.mrb[0].mxu0
  %470 = vdwg.mxu0
  %v471 = vmax.f32 %v402, 0.0
  %v472 = vmax.f32 %v405, 0.0
  %v473 = vmax.f32 %v410, 0.0
  %v474 = vmax.f32 %v413, 0.0
  %v475 = vmax.f32 %v418, 0.0
  %v476 = vmax.f32 %v421, 0.0
  %v477 = vmax.f32 %v426, 0.0
  %v478 = vmax.f32 %v429, 0.0
  %v479 = vmax.f32 %v434, 0.0
  %v480 = vmax.f32 %v437, 0.0
  %v481 = vmax.f32 %v442, 0.0
  %v482 = vmax.f32 %v445, 0.0
  %v483 = vmax.f32 %v450, 0.0
  %v484 = vmax.f32 %v453, 0.0
  %v485 = vmax.f32 %v458, 0.0
  %v486 = vmax.f32 %v461, 0.0
  %v487 = vmax.f32 %v466, 0.0
  %v488 = vpack.c.bf16 %v472, %v471
  %v489 = vpack.c.bf16 %v474, %v473
  %v490 = vpack.c.bf16 %v476, %v475
  %v491 = vpack.c.bf16 %v478, %v477
  %v492 = vpack.c.bf16 %v480, %v479
  %v493 = vpack.c.bf16 %v482, %v481
  %v494 = vpack.c.bf16 %v484, %v483
  %v495 = vpack.c.bf16 %v486, %v485
  %v496 = vpack.c.bf16 %v487, %v487
  %v497 = vld [vmem:[%s4] sm:$0xf]
  %v498 = vld [vmem:[%s4 + $0x4] sm:$0xf]
  %v501 = vunpack.c.l.b16 %v497
  %v502 = vunpack.c.l.b16 %v498
  %v503 = vpack.c.b16 %v502, %v501
  %vm505 = vcmask 130048
  %v507 = vsel %vm505, %v488, 0
  %v510 = vsel %vm505, %v489, 0
  %v513 = vsel %vm505, %v490, 0
  %v516 = vsel %vm505, %v491, 0
  %v519 = vsel %vm505, %v492, 0
  %v522 = vsel %vm505, %v493, 0
  %v525 = vsel %vm505, %v494, 0
  %v528 = vsel %vm505, %v495, 0
  %v531 = vsel %vm505, %v496, 0
  %533 = vmatprep.subr.bf16.mxu0 0
  %534 = vmatpush1.bf16.msra.mxu0 %v503
  %535 = vmatprep.subr.bf16.mxu0 0
  %536 = vmatpush1.bf16.msra.mxu0 0
  %537 = vmatprep.subr.bf16.mxu0 0
  %538 = vmatpush1.bf16.msra.mxu0 0
  %539 = vmatprep.subr.bf16.mxu0 0
  %540 = vmatpush1.bf16.msra.mxu0 0
  %541 = vmatprep.subr.bf16.mxu0 0
  %542 = vmatpush1.bf16.msra.mxu0 0
  %543 = vmatprep.subr.bf16.mxu0 0
  %544 = vmatpush1.bf16.msra.mxu0 0
  %545 = vmatprep.subr.bf16.mxu0 0
  %546 = vmatpush1.bf16.msra.mxu0 0
  %547 = vmatprep.subr.bf16.mxu0 0
  %548 = vmatpush1.bf16.msra.mxu0 0
  %549 = vmatprep.subr.bf16.mxu0 0
  %550 = vmatpush1.bf16.msra.mxu0 0
  %551 = vmatprep.subr.bf16.mxu0 0
  %552 = vmatpush1.bf16.msra.mxu0 0
  %553 = vmatprep.subr.bf16.mxu0 0
  %554 = vmatpush1.bf16.msra.mxu0 0
  %555 = vmatprep.subr.bf16.mxu0 0
  %556 = vmatpush1.bf16.msra.mxu0 0
  %557 = vmatprep.subr.bf16.mxu0 0
  %558 = vmatpush1.bf16.msra.mxu0 0
  %559 = vmatprep.subr.bf16.mxu0 0
  %560 = vmatpush1.bf16.msra.mxu0 0
  %561 = vmatprep.subr.bf16.mxu0 0
  %562 = vmatpush1.bf16.msra.mxu0 0
  %563 = vmatprep.subr.bf16.mxu0 0
  %564 = vmatpush1.bf16.msra.mxu0 0
  %565 = vmatprep.mubr.bf16.mxu0 0
  %566 = vmatmul.mubr.bf16.gmra.mrb[0].mxu0 %v507
  %v567 = vpop.f32.mrb[0].mxu0
  %v568 = vadd.f32 0.0, %v567
  %v569 = vpop.f32.mrb[0].mxu0
  %v570 = vpop.f32.mrb[0].mxu0
  %v571 = vadd.f32 0.0, %v570
  %v572 = vpop.f32.mrb[0].mxu0
  %573 = vmatprep.mubr.bf16.mxu0 0
  %574 = vmatmul.mubr.bf16.gmra.mrb[0].mxu0 %v510
  %v575 = vpop.f32.mrb[0].mxu0
  %v576 = vadd.f32 0.0, %v575
  %v577 = vpop.f32.mrb[0].mxu0
  %v578 = vpop.f32.mrb[0].mxu0
  %v579 = vadd.f32 0.0, %v578
  %v580 = vpop.f32.mrb[0].mxu0
  %581 = vmatprep.mubr.bf16.mxu0 0
  %582 = vmatmul.mubr.bf16.gmra.mrb[0].mxu0 %v513
  %v583 = vpop.f32.mrb[0].mxu0
  %v584 = vadd.f32 0.0, %v583
  %v585 = vpop.f32.mrb[0].mxu0
  %v586 = vpop.f32.mrb[0].mxu0
  %v587 = vadd.f32 0.0, %v586
  %v588 = vpop.f32.mrb[0].mxu0
  %589 = vmatprep.mubr.bf16.mxu0 0
  %590 = vmatmul.mubr.bf16.gmra.mrb[0].mxu0 %v516
  %v591 = vpop.f32.mrb[0].mxu0
  %v592 = vadd.f32 0.0, %v591
  %v593 = vpop.f32.mrb[0].mxu0
  %v594 = vpop.f32.mrb[0].mxu0
  %v595 = vadd.f32 0.0, %v594
  %v596 = vpop.f32.mrb[0].mxu0
  %597 = vmatprep.mubr.bf16.mxu0 0
  %598 = vmatmul.mubr.bf16.gmra.mrb[0].mxu0 %v519
  %v599 = vpop.f32.mrb[0].mxu0
  %v600 = vadd.f32 0.0, %v599
  %v601 = vpop.f32.mrb[0].mxu0
  %v602 = vpop.f32.mrb[0].mxu0
  %v603 = vadd.f32 0.0, %v602
  %v604 = vpop.f32.mrb[0].mxu0
  %605 = vmatprep.mubr.bf16.mxu0 0
  %606 = vmatmul.mubr.bf16.gmra.mrb[0].mxu0 %v522
  %v607 = vpop.f32.mrb[0].mxu0
  %v608 = vadd.f32 0.0, %v607
  %v609 = vpop.f32.mrb[0].mxu0
  %v610 = vpop.f32.mrb[0].mxu0
  %v611 = vadd.f32 0.0, %v610
  %v612 = vpop.f32.mrb[0].mxu0
  %613 = vmatprep.mubr.bf16.mxu0 0
  %614 = vmatmul.mubr.bf16.gmra.mrb[0].mxu0 %v525
  %v615 = vpop.f32.mrb[0].mxu0
  %v616 = vadd.f32 0.0, %v615
  %v617 = vpop.f32.mrb[0].mxu0
  %v618 = vpop.f32.mrb[0].mxu0
  %v619 = vadd.f32 0.0, %v618
  %v620 = vpop.f32.mrb[0].mxu0
  %621 = vmatprep.mubr.bf16.mxu0 0
  %622 = vmatmul.mubr.bf16.gmra.mrb[0].mxu0 %v528
  %v623 = vpop.f32.mrb[0].mxu0
  %v624 = vadd.f32 0.0, %v623
  %v625 = vpop.f32.mrb[0].mxu0
  %v626 = vpop.f32.mrb[0].mxu0
  %v627 = vadd.f32 0.0, %v626
  %v628 = vpop.f32.mrb[0].mxu0
  %629 = vmatprep.mubr.bf16.mxu0 0
  %630 = vmatmul.mubr.bf16.gmra.mrb[0].mxu0 %v531
  %v631 = vpop.f32.mrb[0].mxu0
  %v632 = vadd.f32 0.0, %v631
  %v633 = vpop.f32.mrb[0].mxu0
  %v634 = vpop.f32.mrb[0].mxu0
  %v635 = vpop.f32.mrb[0].mxu0
  %636 = vdwg.mxu0
  %v637 = vpack.c.bf16 %v571, %v568
  %v638 = vpack.c.bf16 %v579, %v576
  %v639 = vpack.c.bf16 %v587, %v584
  %v640 = vpack.c.bf16 %v595, %v592
  %v641 = vpack.c.bf16 %v603, %v600
  %v642 = vpack.c.bf16 %v611, %v608
  %v643 = vpack.c.bf16 %v619, %v616
  %v644 = vpack.c.bf16 %v627, %v624
  %v645 = vpack.c.bf16 %v632, %v632
  %v646 = vld [vmem:[%s5] sm:$0x1]
  %v648 = vlaneseq
  %v649 = vshrl.u32 %v648, 7
  %v650 = vsub.s32 0, %v649
  %v651 = vrot.slane %v646, %v650
  %v654 = vsel %vm363, %v645, 0
  %656 = vmatprep.subr.bf16.mxu0 0
  %657 = vmatpush1.bf16.msra.mxu0 %v637
  %658 = vmatprep.subr.bf16.mxu0 0
  %659 = vmatpush1.bf16.msra.mxu0 %v638
  %660 = vmatprep.subr.bf16.mxu0 0
  %661 = vmatpush1.bf16.msra.mxu0 %v639
  %662 = vmatprep.subr.bf16.mxu0 0
  %663 = vmatpush1.bf16.msra.mxu0 %v640
  %664 = vmatprep.subr.bf16.mxu0 0
  %665 = vmatpush1.bf16.msra.mxu0 %v641
  %666 = vmatprep.subr.bf16.mxu0 0
  %667 = vmatpush1.bf16.msra.mxu0 %v642
  %668 = vmatprep.subr.bf16.mxu0 0
  %669 = vmatpush1.bf16.msra.mxu0 %v643
  %670 = vmatprep.subr.bf16.mxu0 0
  %671 = vmatpush1.bf16.msra.mxu0 %v644
  %672 = vmatprep.subr.bf16.mxu0 0
  %673 = vmatpush1.bf16.msra.mxu0 %v654
  %674 = vmatprep.subr.bf16.mxu0 0
  %675 = vmatpush1.bf16.msra.mxu0 0
  %676 = vmatprep.subr.bf16.mxu0 0
  %677 = vmatpush1.bf16.msra.mxu0 0
  %678 = vmatprep.subr.bf16.mxu0 0
  %679 = vmatpush1.bf16.msra.mxu0 0
  %680 = vmatprep.subr.bf16.mxu0 0
  %681 = vmatpush1.bf16.msra.mxu0 0
  %682 = vmatprep.subr.bf16.mxu0 0
  %683 = vmatpush1.bf16.msra.mxu0 0
  %684 = vmatprep.subr.bf16.mxu0 0
  %685 = vmatpush1.bf16.msra.mxu0 0
  %686 = vmatprep.subr.bf16.mxu0 0
  %687 = vmatpush1.bf16.msra.mxu0 0
  %688 = vmatprep.mubr.bf16.mxu0 %v337
  %689 = vmatmul.mubr.bf16.gmra.mrb[0].mxu0 %v308
  %v690 = vpop.f32.mrb[0].mxu0
  %v691 = vadd.f32 %v651, %v690
  %v692 = vpop.f32.mrb[0].mxu0
  %v693 = vpop.f32.mrb[0].mxu0
  %v694 = vadd.f32 %v651, %v693
  %v695 = vpop.f32.mrb[0].mxu0
  %696 = vmatprep.mubr.bf16.mxu0 %v340
  %697 = vmatmul.mubr.bf16.gmra.mrb[0].mxu0 %v310
  %v698 = vpop.f32.mrb[0].mxu0
  %v699 = vadd.f32 %v651, %v698
  %v700 = vpop.f32.mrb[0].mxu0
  %v701 = vpop.f32.mrb[0].mxu0
  %v702 = vadd.f32 %v651, %v701
  %v703 = vpop.f32.mrb[0].mxu0
  %704 = vmatprep.mubr.bf16.mxu0 %v343
  %705 = vmatmul.mubr.bf16.gmra.mrb[0].mxu0 %v312
  %v706 = vpop.f32.mrb[0].mxu0
  %v707 = vadd.f32 %v651, %v706
  %v708 = vpop.f32.mrb[0].mxu0
  %v709 = vpop.f32.mrb[0].mxu0
  %v710 = vadd.f32 %v651, %v709
  %v711 = vpop.f32.mrb[0].mxu0
  %712 = vmatprep.mubr.bf16.mxu0 %v346
  %713 = vmatmul.mubr.bf16.gmra.mrb[0].mxu0 %v314
  %v714 = vpop.f32.mrb[0].mxu0
  %v715 = vadd.f32 %v651, %v714
  %v716 = vpop.f32.mrb[0].mxu0
  %v717 = vpop.f32.mrb[0].mxu0
  %v718 = vadd.f32 %v651, %v717
  %v719 = vpop.f32.mrb[0].mxu0
  %720 = vmatprep.mubr.bf16.mxu0 %v349
  %721 = vmatmul.mubr.bf16.gmra.mrb[0].mxu0 %v316
  %v722 = vpop.f32.mrb[0].mxu0
  %v723 = vadd.f32 %v651, %v722
  %v724 = vpop.f32.mrb[0].mxu0
  %v725 = vpop.f32.mrb[0].mxu0
  %v726 = vadd.f32 %v651, %v725
  %v727 = vpop.f32.mrb[0].mxu0
  %728 = vmatprep.mubr.bf16.mxu0 %v352
  %729 = vmatmul.mubr.bf16.gmra.mrb[0].mxu0 %v318
  %v730 = vpop.f32.mrb[0].mxu0
  %v731 = vadd.f32 %v651, %v730
  %v732 = vpop.f32.mrb[0].mxu0
  %v733 = vpop.f32.mrb[0].mxu0
  %v734 = vadd.f32 %v651, %v733
  %v735 = vpop.f32.mrb[0].mxu0
  %736 = vmatprep.mubr.bf16.mxu0 %v355
  %737 = vmatmul.mubr.bf16.gmra.mrb[0].mxu0 %v320
  %v738 = vpop.f32.mrb[0].mxu0
  %v739 = vadd.f32 %v651, %v738
  %v740 = vpop.f32.mrb[0].mxu0
  %v741 = vpop.f32.mrb[0].mxu0
  %v742 = vadd.f32 %v651, %v741
  %v743 = vpop.f32.mrb[0].mxu0
  %744 = vmatprep.mubr.bf16.mxu0 %v358
  %745 = vmatmul.mubr.bf16.gmra.mrb[0].mxu0 %v322
  %v746 = vpop.f32.mrb[0].mxu0
  %v747 = vadd.f32 %v651, %v746
  %v748 = vpop.f32.mrb[0].mxu0
  %v749 = vpop.f32.mrb[0].mxu0
  %v750 = vadd.f32 %v651, %v749
  %v751 = vpop.f32.mrb[0].mxu0
  %752 = vmatprep.mubr.bf16.mxu0 %v361
  %753 = vmatmul.mubr.bf16.gmra.mrb[0].mxu0 %v324
  %v754 = vpop.f32.mrb[0].mxu0
  %v755 = vadd.f32 %v651, %v754
  %v756 = vpop.f32.mrb[0].mxu0
  %v757 = vpop.f32.mrb[0].mxu0
  %v758 = vpop.f32.mrb[0].mxu0
  %759 = vdwg.mxu0
  %vm760 = vcmask 15360
  %761 = vst.msk [vmem:[%s6] sm:$0xff] %vm760, %v691
  %762 = vst.msk [vmem:[%s6 + $0x8] sm:$0xff] %vm760, %v694
  %763 = vst.msk [vmem:[%s6 + $0x10] sm:$0xff] %vm760, %v699
  %764 = vst.msk [vmem:[%s6 + $0x18] sm:$0xff] %vm760, %v702
  %765 = vst.msk [vmem:[%s6 + $0x20] sm:$0xff] %vm760, %v707
  %766 = vst.msk [vmem:[%s6 + $0x28] sm:$0xff] %vm760, %v710
  %767 = vst.msk [vmem:[%s6 + $0x30] sm:$0xff] %vm760, %v715
  %768 = vst.msk [vmem:[%s6 + $0x38] sm:$0xff] %vm760, %v718
  %769 = vst.msk [vmem:[%s6 + $0x40] sm:$0xff] %vm760, %v723
  %770 = vst.msk [vmem:[%s6 + $0x48] sm:$0xff] %vm760, %v726
  %771 = vst.msk [vmem:[%s6 + $0x50] sm:$0xff] %vm760, %v731
  %772 = vst.msk [vmem:[%s6 + $0x58] sm:$0xff] %vm760, %v734
  %773 = vst.msk [vmem:[%s6 + $0x60] sm:$0xff] %vm760, %v739
  %774 = vst.msk [vmem:[%s6 + $0x68] sm:$0xff] %vm760, %v742
  %775 = vst.msk [vmem:[%s6 + $0x70] sm:$0xff] %vm760, %v747
  %776 = vst.msk [vmem:[%s6 + $0x78] sm:$0xff] %vm760, %v750
  %777 = vst.msk [vmem:[%s6 + $0x80] sm:$0xff] %vm760, %v755
  // Predicated region
  $region26: #{gcn_forward_batched.1} parent=0 // pred_check
    _
  $region27: #{gcn_forward_batched.1} parent=0 // pred_check_branch
    %779 = sbr.rel (0) target = $region29
  $region28: #{gcn_forward_batched.1} parent=0 // pred_region
    _
  $region29: #{gcn_forward_batched.1} parent=0 // pred_fallthru
    _
  // Predicated region
  $region30: #{gcn_forward_batched.1} parent=0 // pred_check
    _
  $region31: #{gcn_forward_batched.1} parent=0 // pred_check_branch
    %781 = sbr.rel (0) target = $region33
  $region32: #{gcn_forward_batched.1} parent=0 // pred_region
    _
  $region33: #{gcn_forward_batched.1} parent=0 // pred_fallthru
    _

</llo_original>
